<compile_context>
chip_gen: v7x
topology: tpu7x:2x2x1
jax: 0.10.0
libtpu: 0.0.40
codegen_flags: <defaults>
</compile_context>

<pallas_src>
import math
import functools

import jax
import jax.numpy as jnp
from jax.experimental import pallas as pl
from jax.experimental.pallas import tpu as pltpu


# MXU input dtype.  bf16 runs the MXU at full rate on v5e/v6e/v7x; all
# accumulation stays f32 (preferred_element_type) and all sparsemax math is f32.
_MXU_DTYPE = jnp.bfloat16

_NEG_BIG = -9000000000000000.0
_BISECT_ITERS = 30          # interval width 1.0 -> ~1e-9, then exact correction
_ATTN_VMEM_BUDGET = 44 << 20  # conservative working-set budget (v7x: 64 MiB VMEM)


def _pick_tile(dim: int, pref: int) -> int:
    """Largest tile <= pref that evenly divides dim (never the full huge dim)."""
    if dim <= pref:
        return dim
    if dim % pref == 0:
        return pref
    for t in range(pref, 0, -1):
        if dim % t == 0:
            return t
    return dim


# ----------------------------- Linear kernels ------------------------------ #
def _linear_kernel_inplace(x_ref, w_ref, b_ref, o_ref):
    # f32 output block is resident across the k axis: accumulate directly into
    # it (bias at k == 0), no extra VMEM scratch.
    @pl.when(pl.program_id(2) == 0)
    def _():
        o_ref[...] = jnp.broadcast_to(b_ref[...], o_ref.shape)

    o_ref[...] += jnp.dot(
        x_ref[...].astype(_MXU_DTYPE),
        w_ref[...].astype(_MXU_DTYPE),
        preferred_element_type=jnp.float32,
    )


def _linear_kernel_scratch(x_ref, w_ref, b_ref, o_ref, acc_ref):
    # Used when the output dtype is narrower than f32 (bf16 activations):
    # keep the f32 accumulator in scratch and cast once at the end.
    @pl.when(pl.program_id(2) == 0)
    def _():
        acc_ref[...] = jnp.broadcast_to(b_ref[...], acc_ref.shape)

    acc_ref[...] += jnp.dot(
        x_ref[...].astype(_MXU_DTYPE),
        w_ref[...].astype(_MXU_DTYPE),
        preferred_element_type=jnp.float32,
    )

    @pl.when(pl.program_id(2) == pl.num_programs(2) - 1)
    def _():
        o_ref[...] = acc_ref[...].astype(o_ref.dtype)


def pallas_linear(x, w_t, b, *, out_dtype=jnp.float32, tm=256, tn=256, tk=256):
    """y = x @ w_t + b with x:(M,K), w_t:(K,N) (weight pre-transposed), b:(N,)."""
    M, K = x.shape
    N = w_t.shape[1]
    tm, tn, tk = _pick_tile(M, tm), _pick_tile(N, tn), _pick_tile(K, tk)
    grid = (M // tm, N // tn, K // tk)
    inplace = jnp.dtype(out_dtype) == jnp.dtype(jnp.float32)
    kernel = _linear_kernel_inplace if inplace else _linear_kernel_scratch
    scratch = [] if inplace else [pltpu.VMEM((tm, tn), jnp.float32)]
    return pl.pallas_call(
        kernel,
        out_shape=jax.ShapeDtypeStruct((M, N), out_dtype),
        grid_spec=pltpu.PrefetchScalarGridSpec(
            num_scalar_prefetch=0,
            grid=grid,
            in_specs=[
                pl.BlockSpec((tm, tk), lambda i, j, k: (i, k)),
                pl.BlockSpec((tk, tn), lambda i, j, k: (k, j)),
                pl.BlockSpec((1, tn), lambda i, j, k: (0, j)),
            ],
            out_specs=pl.BlockSpec((tm, tn), lambda i, j, k: (i, j)),
            scratch_shapes=scratch,
        ),
        compiler_params=pltpu.CompilerParams(
            dimension_semantics=("parallel", "parallel", "arbitrary")
        ),
    )(x, w_t, b.reshape(1, N).astype(jnp.float32))


# ----------------------- Sparsemax attention kernel ----------------------- #
def _sparsemax_rows(z):
    """Exact sparsemax along the last axis of z:(R, C) in f32.

    Bisection on tau solving sum(max(z - tau, 0)) == 1 (pure VPU work,
    O(iters * R * C)), then one exact correction pass
    (support = {z >= tau_approx}, tau = (sum_support - 1) / |support|),
    which matches the sort-based reference to f32 precision."""
    zmax = jnp.max(z, axis=-1, keepdims=True)
    lo, hi = zmax - 1.0, zmax          # invariant: lo <= tau* <= hi

    def body(_, carry):
        lo, hi = carry
        mid = 0.5 * (lo + hi)
        s = jnp.sum(jnp.maximum(z - mid, 0.0), axis=-1, keepdims=True)
        too_high = s < 1.0
        hi = jnp.where(too_high, mid, hi)
        lo = jnp.where(too_high, lo, mid)
        return lo, hi

    lo, hi = jax.lax.fori_loop(0, _BISECT_ITERS, body, (lo, hi))
    tau0 = 0.5 * (lo + hi)
    sup = z >= tau0
    ksz = jnp.maximum(jnp.sum(sup.astype(jnp.float32), axis=-1, keepdims=True), 1.0)
    ssum = jnp.sum(jnp.where(sup, z, 0.0), axis=-1, keepdims=True)
    tau = (ssum - 1.0) * pl.reciprocal(ksz, approx=False)
    return jnp.maximum(z - tau, 0.0)


def _attn_kernel(*refs, nhead, d_k, has_mask, store_attn):
    q_ref, k_ref, v_ref = refs[:3]
    idx = 3
    m_ref = None
    if has_mask:
        m_ref = refs[idx]
        idx += 1
    o_ref = refs[idx]
    idx += 1
    a_ref = refs[idx] if store_attn else None

    q = q_ref[0]          # (tq, D) bf16; 1/sqrt(d_k) already folded into W_q.
    k = k_ref[0]          # (Lk, D) bf16
    v = v_ref[0]          # (Lk, D) bf16

    bias = None
    if m_ref is not None:
        # Hoisted once per (tq, Lk) tile and shared by all heads.
        bias = jnp.where(m_ref[0] == 0, jnp.float32(_NEG_BIG), jnp.float32(0.0))

    outs = []
    for h in range(nhead):            # short static trip count (heads)
        sl = slice(h * d_k, (h + 1) * d_k)
        z = jax.lax.dot_general(
            q[:, sl].astype(_MXU_DTYPE),
            k[:, sl].astype(_MXU_DTYPE),
            (((1,), (1,)), ((), ())),
            preferred_element_type=jnp.float32,
        )                              # (tq, Lk) f32
        if bias is not None:
            z = z + bias
        p = _sparsemax_rows(z)
        if a_ref is not None:
            a_ref[0, h] = p.astype(a_ref.dtype)
        outs.append(
            jnp.dot(p.astype(_MXU_DTYPE), v[:, sl].astype(_MXU_DTYPE),
                    preferred_element_type=jnp.float32)
        )
    out = outs[0] if nhead == 1 else jnp.concatenate(outs, axis=-1)
    # Single lane-dense (tq, D) store (heads concatenated along the lane axis).
    o_ref[0] = out.astype(o_ref.dtype)


def _attn_vmem_est(tq, Lk, D, nhead, has_mask, store_attn, attn_itemsize=4):
    est = 2 * (tq * D * 2)            # q blocks (bf16, double-buffered)
    est += 2 * 2 * (Lk * D * 2)       # k and v blocks
    est += 2 * (tq * D * 2)           # output block
    if has_mask:
        est += 2 * (tq * Lk * 2)      # bf16 mask block
    if store_attn:
        est += 2 * (nhead * tq * Lk * attn_itemsize)
    est += 8 * (tq * Lk * 4)          # logits / sparsemax temporaries headroom
    return est


def _choose_tq(B, Lq, Lk, D, nhead, has_mask, store_attn):
    tq = _pick_tile(Lq, 128)
    # v7x has two TensorCores: expose >= 2 parallel grid steps when possible.
    if B * (Lq // tq) < 2 and tq > 8:
        tq = _pick_tile(Lq, max(8, tq // 2))
    # Shrink tq until the working set fits a conservative (v7x 64 MiB) budget.
    while tq > 8 and _attn_vmem_est(tq, Lk, D, nhead, has_mask, store_attn) > _ATTN_VMEM_BUDGET:
        new = _pick_tile(Lq, max(8, tq // 2))
        if new >= tq:
            break
        tq = new
    return tq


def _attention_call(args, qkv_specs, B, Lq, Lk, D, nhead, mask, *, tq,
                    store_attn=True, out_dtype=jnp.bfloat16,
                    attn_dtype=jnp.float32):
    d_k = D // nhead
    has_mask = mask is not None

    in_specs = list(qkv_specs)
    call_args = list(args)
    if has_mask:
        in_specs.append(pl.BlockSpec((1, tq, Lk), lambda b, qi: (b, qi, 0)))
        call_args.append(mask.astype(jnp.bfloat16))   # compact 0/1 mask

    out_shapes = [jax.ShapeDtypeStruct((B, Lq, D), out_dtype)]
    out_specs = [pl.BlockSpec((1, tq, D), lambda b, qi: (b, qi, 0))]
    if store_attn:
        out_shapes.append(jax.ShapeDtypeStruct((B, nhead, Lq, Lk), attn_dtype))
        out_specs.append(
            pl.BlockSpec((1, nhead, tq, Lk), lambda b, qi: (b, 0, qi, 0)))

    kernel = functools.partial(_attn_kernel, nhead=nhead, d_k=d_k,
                               has_mask=has_mask, store_attn=store_attn)

    est = _attn_vmem_est(tq, Lk, D, nhead, has_mask, store_attn,
                         jnp.dtype(attn_dtype).itemsize)
    vmem_limit = int(min(110 << 20, max(32 << 20, 1.4 * est)))

    res = pl.pallas_call(
        kernel,
        out_shape=tuple(out_shapes),
        grid=(B, Lq // tq),
        in_specs=in_specs,
        out_specs=tuple(out_specs),
        compiler_params=pltpu.CompilerParams(
            dimension_semantics=("parallel", "parallel"),
            vmem_limit_bytes=vmem_limit,
        ),
    )(*call_args)
    if store_attn:
        return res[0], res[1]
    return res[0], None


def sparsemax_mha_attention(q, k, v, mask, nhead, store_attn=True):
    """q:(B,Lq,D), k/v:(B,Lk,D); 1/sqrt(d_k) already folded into q."""
    B, Lq, D = q.shape
    Lk = k.shape[1]
    tq = _choose_tq(B, Lq, Lk, D, nhead, mask is not None, store_attn)
    specs = [
        pl.BlockSpec((1, tq, D), lambda b, qi: (b, qi, 0)),
        pl.BlockSpec((1, Lk, D), lambda b, qi: (b, 0, 0)),   # K resident across q tiles
        pl.BlockSpec((1, Lk, D), lambda b, qi: (b, 0, 0)),   # V resident across q tiles
    ]
    return _attention_call([q, k, v], specs, B, Lq, Lk, D, nhead, mask,
                           tq=tq, store_attn=store_attn)


def sparsemax_mha_attention_fused(qkv, mask, nhead, store_attn=True):
    """Self-attention: qkv:(B, L, 3*D) fused projection output.  The q/k/v
    panels are picked out by BlockSpec index maps (requires D % 128 == 0)."""
    B, L, threeD = qkv.shape
    D = threeD // 3
    tq = _choose_tq(B, L, L, D, nhead, mask is not None, store_attn)
    specs = [
        pl.BlockSpec((1, tq, D), lambda b, qi: (b, qi, 0)),  # Q panel
        pl.BlockSpec((1, L, D), lambda b, qi: (b, 0, 1)),    # K panel
        pl.BlockSpec((1, L, D), lambda b, qi: (b, 0, 2)),    # V panel
    ]
    return _attention_call([qkv, qkv, qkv], specs, B, L, L, D, nhead, mask,
                           tq=tq, store_attn=store_attn)


# ------------------------------ MHA wrapper -------------------------------- #
class MultiHeadAttentionPallas:
    def __init__(self, d_model, nhead, key, dropout=0.1):
        assert d_model % nhead == 0, "d_model must be divisible by nhead"
        self.d_model = d_model
        self.nhead = nhead
        self.d_k = d_model // nhead
        # nn.Linear default init: U(-1/sqrt(in_features), 1/sqrt(in_features))
        bound = 1.0 / math.sqrt(d_model)
        ks = jax.random.split(key, 8)

        def init_linear(kw, kb):
            w = jax.random.uniform(kw, (d_model, d_model), jnp.float32, -bound, bound)
            b = jax.random.uniform(kb, (d_model,), jnp.float32, -bound, bound)
            return w, b

        self.w_q, self.b_q = init_linear(ks[0], ks[1])
        self.w_k, self.b_k = init_linear(ks[2], ks[3])
        self.w_v, self.b_v = init_linear(ks[4], ks[5])
        self.w_fc, self.b_fc = init_linear(ks[6], ks[7])

        # 1/sqrt(d_k) folded into the Q projection (weights AND bias) so the
        # attention kernel never multiplies by the scale.
        scale = 1.0 / math.sqrt(self.d_k)
        wq_t = self.w_q.T * scale
        self.b_q_s = self.b_q * scale

        # Pre-transposed bf16 weights for the (M,K)x(K,N) MXU kernel.
        self.w_q_t = wq_t.astype(_MXU_DTYPE)
        self.w_k_t = self.w_k.T.astype(_MXU_DTYPE)
        self.w_v_t = self.w_v.T.astype(_MXU_DTYPE)
        self.w_fc_t = self.w_fc.T.astype(_MXU_DTYPE)

        # Fused QKV weight/bias for the self-attention fast path (one matmul,
        # one read of the activations instead of three).
        self.w_qkv_t = jnp.concatenate(
            [wq_t, self.w_k.T, self.w_v.T], axis=1).astype(_MXU_DTYPE)
        self.b_qkv = jnp.concatenate([self.b_q_s, self.b_k, self.b_v])
        # TODO(synk): nn.Dropout is identity in eval mode; stochastic dropout not applied.

    def __call__(self, query, key, value, mask=None):
        B, Lq, D = query.shape
        Lk = key.shape[1]

        if (query is key) and (key is value):
            # Self-attention: fused (D, 3D) projection, bf16 activations.
            qkv = pallas_linear(query.reshape(B * Lq, D), self.w_qkv_t,
                                self.b_qkv, out_dtype=_MXU_DTYPE)
            if D % 128 == 0:
                # q/k/v read straight out of the fused buffer via BlockSpecs.
                attn_out, attention = sparsemax_mha_attention_fused(
                    qkv.reshape(B, Lq, 3 * D), mask, self.nhead)
            else:
                q2 = qkv[:, :D].reshape(B, Lq, D)
                k2 = qkv[:, D:2 * D].reshape(B, Lk, D)
                v2 = qkv[:, 2 * D:].reshape(B, Lk, D)
                attn_out, attention = sparsemax_mha_attention(
                    q2, k2, v2, mask, self.nhead)
        else:
            q2 = pallas_linear(query.reshape(B * Lq, D), self.w_q_t, self.b_q_s,
                               out_dtype=_MXU_DTYPE).reshape(B, Lq, D)
            k2 = pallas_linear(key.reshape(B * Lk, D), self.w_k_t, self.b_k,
                               out_dtype=_MXU_DTYPE).reshape(B, Lk, D)
            v2 = pallas_linear(value.reshape(B * Lk, D), self.w_v_t, self.b_v,
                               out_dtype=_MXU_DTYPE).reshape(B, Lk, D)
            attn_out, attention = sparsemax_mha_attention(
                q2, k2, v2, mask, self.nhead)

        output = pallas_linear(attn_out.reshape(B * Lq, D), self.w_fc_t,
                               self.b_fc, out_dtype=jnp.float32)
        return output.reshape(B, Lq, D), attention


# --------------------------- pure-JAX reference ---------------------------- #
def _sparsemax_ref(z):
    z_sorted = -jnp.sort(-z, axis=-1)
    kk = jnp.arange(1, z.shape[-1] + 1, dtype=z.dtype)
    cum = jnp.cumsum(z_sorted, axis=-1)
    support = 1.0 + kk * z_sorted > cum
    ksz = jnp.sum(support.astype(z.dtype), axis=-1, keepdims=True)
    idx = ksz.astype(jnp.int32) - 1
    s = jnp.take_along_axis(cum, idx, axis=-1)
    tau = (s - 1.0) / ksz
    return jnp.maximum(z - tau, 0.0)


def _mha_ref(m, query, key, value, mask=None):
    B, Lq, D = query.shape
    Lk = key.shape[1]
    H, dk = m.nhead, m.d_k
    q = query @ m.w_q.T + m.b_q
    k = key @ m.w_k.T + m.b_k
    v = value @ m.w_v.T + m.b_v
    q = q.reshape(B, Lq, H, dk).transpose(0, 2, 1, 3)
    k = k.reshape(B, Lk, H, dk).transpose(0, 2, 1, 3)
    v = v.reshape(B, Lk, H, dk).transpose(0, 2, 1, 3)
    logits = jnp.einsum("bhqd,bhkd->bhqk", q, k) / math.sqrt(dk)
    if mask is not None:
        logits = jnp.where(mask[:, None] == 0, _NEG_BIG, logits)
    attn = _sparsemax_ref(logits)
    out = jnp.einsum("bhqk,bhkd->bhqd", attn, v)
    out = out.transpose(0, 2, 1, 3).reshape(B, Lq, D)
    out = out @ m.w_fc.T + m.b_fc
    return out, attn


if __name__ == "__main__":
    B, L, d_model, nhead = 2, 8, 32, 4
    root = jax.random.PRNGKey(0)
    k_params, k_q, k_k, k_v, k_m = jax.random.split(root, 5)

    mha = MultiHeadAttentionPallas(d_model, nhead, k_params)

    query = jax.random.normal(k_q, (B, L, d_model), jnp.float32)
    key = jax.random.normal(k_k, (B, L, d_model), jnp.float32)
    value = jax.random.normal(k_v, (B, L, d_model), jnp.float32)

    # bf16 MXU inputs / bf16 activation streaming loosen the tolerance vs. the
    # f32 reference; 5e-2 gives comfortable margin at these magnitudes.
    RTOL = ATOL = 5e-2

    # 1) cross-attention (separate projections), no mask.
    out, attn = mha(query, key, value, mask=None)
    out = jax.block_until_ready(out)
    attn = jax.block_until_ready(attn)
    out_ref, attn_ref = _mha_ref(mha, query, key, value, mask=None)
    assert out.shape == (B, L, d_model) and attn.shape == (B, nhead, L, L)
    assert jnp.allclose(out, out_ref, rtol=RTOL, atol=ATOL)
    assert jnp.allclose(attn, attn_ref, rtol=RTOL, atol=ATOL)

    # 2) self-attention fast path (fused QKV) with a 0/1 mask.
    mask = (jax.random.uniform(k_m, (B, L, L)) > 0.3).astype(jnp.float32)
    mask = mask.at[:, :, 0].set(1.0)  # avoid fully-masked rows (ill-defined sparsemax)
    out2, attn2 = mha(query, query, query, mask=mask)
    out2 = jax.block_until_ready(out2)
    attn2 = jax.block_until_ready(attn2)
    out2_ref, attn2_ref = _mha_ref(mha, query, query, query, mask=mask)
    assert jnp.allclose(out2, out2_ref, rtol=RTOL, atol=ATOL)
    assert jnp.allclose(attn2, attn2_ref, rtol=RTOL, atol=ATOL)

    print("KERNEL_OK")
</pallas_src>

<mosaic_0001>
module attributes {stable_mosaic.version = 11 : i64} {
  func.func @_linear_kernel_scratch(%arg0: i32, %arg1: i32, %arg2: i32, %arg3: memref<16x32xf32, #tpu.memory_space<vmem>>, %arg4: memref<32x32xbf16, #tpu.memory_space<vmem>>, %arg5: memref<1x32xf32, #tpu.memory_space<vmem>>, %arg6: memref<16x32xbf16, #tpu.memory_space<vmem>>, %arg7: memref<16x32xf32, #tpu.memory_space<vmem>>) attributes {dimension_semantics = [#tpu.dimension_semantics<parallel>, #tpu.dimension_semantics<parallel>, #tpu.dimension_semantics<arbitrary>], iteration_bounds = array<i64: 1, 1, 1>, scalar_prefetch = 0 : i64, scratch_operands = 1 : i64, tpu.core_type = #tpu.core_type<tc>, window_params = [{transform_indices = @transform_0, window_bounds = array<i64: 16, 32>}, {transform_indices = @transform_1, window_bounds = array<i64: 32, 32>}, {transform_indices = @transform_2, window_bounds = array<i64: 1, 32>}, {transform_indices = @transform_3, window_bounds = array<i64: 16, 32>}]} {
    %c0_i32 = arith.constant 0 : i32
    %0 = arith.cmpi eq, %arg2, %c0_i32 : i32
    %1 = arith.extui %0 : i1 to i32
    %c0_i32_0 = arith.constant 0 : i32
    %2 = arith.cmpi ne, %1, %c0_i32_0 : i32
    scf.if %2 {
      %c0_10 = arith.constant 0 : index
      %c0_11 = arith.constant 0 : index
      %13 = vector.load %arg5[%c0_10, %c0_11] : memref<1x32xf32, #tpu.memory_space<vmem>>, vector<1x32xf32>
      %14 = vector.shape_cast %13 : vector<1x32xf32> to vector<1x32xf32>
      %15 = vector.broadcast %14 : vector<1x32xf32> to vector<16x32xf32>
      %c0_12 = arith.constant 0 : index
      %c0_13 = arith.constant 0 : index
      %16 = vector.load %arg7[%c0_12, %c0_13] : memref<16x32xf32, #tpu.memory_space<vmem>>, vector<16x32xf32>
      tpu.vector_store %arg7[%c0_12, %c0_13], %15 {strides = array<i32>} : memref<16x32xf32, #tpu.memory_space<vmem>>, vector<16x32xf32>,
    } else {
    }
    %c0 = arith.constant 0 : index
    %c0_1 = arith.constant 0 : index
    %3 = vector.load %arg7[%c0, %c0_1] : memref<16x32xf32, #tpu.memory_space<vmem>>, vector<16x32xf32>
    %c0_2 = arith.constant 0 : index
    %c0_3 = arith.constant 0 : index
    %4 = vector.load %arg3[%c0_2, %c0_3] : memref<16x32xf32, #tpu.memory_space<vmem>>, vector<16x32xf32>
    %5 = arith.truncf %4 : vector<16x32xf32> to vector<16x32xbf16>
    %c0_4 = arith.constant 0 : index
    %c0_5 = arith.constant 0 : index
    %6 = vector.load %arg4[%c0_4, %c0_5] : memref<32x32xbf16, #tpu.memory_space<vmem>>, vector<32x32xbf16>
    %cst = arith.constant dense<0.000000e+00> : vector<16x32xf32>
    %7 = tpu.matmul %5, %6, %cst {dimension_numbers = #tpu.dot_dimension_numbers<[1], [0], [0], [1], [0, 0, 1, 1], [], []>} : vector<16x32xbf16>, vector<32x32xbf16>, vector<16x32xf32> -> vector<16x32xf32>
    %8 = arith.addf %3, %7 : vector<16x32xf32>
    %c0_6 = arith.constant 0 : index
    %c0_7 = arith.constant 0 : index
    %9 = vector.load %arg7[%c0_6, %c0_7] : memref<16x32xf32, #tpu.memory_space<vmem>>, vector<16x32xf32>
    tpu.vector_store %arg7[%c0_6, %c0_7], %8 {strides = array<i32>} : memref<16x32xf32, #tpu.memory_space<vmem>>, vector<16x32xf32>,
    %c0_i32_8 = arith.constant 0 : i32
    %10 = arith.cmpi eq, %arg2, %c0_i32_8 : i32
    %11 = arith.extui %10 : i1 to i32
    %c0_i32_9 = arith.constant 0 : i32
    %12 = arith.cmpi ne, %11, %c0_i32_9 : i32
    scf.if %12 {
      %c0_10 = arith.constant 0 : index
      %c0_11 = arith.constant 0 : index
      %13 = vector.load %arg7[%c0_10, %c0_11] : memref<16x32xf32, #tpu.memory_space<vmem>>, vector<16x32xf32>
      %14 = arith.truncf %13 : vector<16x32xf32> to vector<16x32xbf16>
      %c0_12 = arith.constant 0 : index
      %c0_13 = arith.constant 0 : index
      %15 = vector.load %arg6[%c0_12, %c0_13] : memref<16x32xbf16, #tpu.memory_space<vmem>>, vector<16x32xbf16>
      tpu.vector_store %arg6[%c0_12, %c0_13], %14 {strides = array<i32>} : memref<16x32xbf16, #tpu.memory_space<vmem>>, vector<16x32xbf16>,
    } else {
    }
    return
  }
  func.func @transform_0(%arg0: i32, %arg1: i32, %arg2: i32) -> (i32, i32) {
    %c0_i32 = arith.constant 0 : i32
    return %arg0, %arg2 : i32, i32
  }
  func.func @transform_1(%arg0: i32, %arg1: i32, %arg2: i32) -> (i32, i32) {
    %c0_i32 = arith.constant 0 : i32
    return %arg2, %arg1 : i32, i32
  }
  func.func @transform_2(%arg0: i32, %arg1: i32, %arg2: i32) -> (i32, i32) {
    %c0_i32 = arith.constant 0 : i32
    %c0_i32_0 = arith.constant 0 : i32
    return %c0_i32, %arg1 : i32, i32
  }
  func.func @transform_3(%arg0: i32, %arg1: i32, %arg2: i32) -> (i32, i32) {
    %c0_i32 = arith.constant 0 : i32
    return %arg0, %arg1 : i32, i32
  }
}

</mosaic_0001>

<llo_original>
// kernel: tpu_custom_call.1
$region0: #{tpu_custom_call.1}
  #allocation0 [shape = 'u32[]', space=smem, size = 0x4, offset = 0x4, fixed_abs, tag = 'smem constant byte address 0x4 - core index']
  #allocation1 [shape = 'u32[144,128]{1,0:T(1,128)}', space=vmem, size = 0x12000, scoped, tag = 'internal scratch']
  #allocation2 [shape = 'f32[16,32]{1,0:T(8,128)}', space=vmem, size = 0x2000, scoped, tag = 'scratch operand']
  %s0 = inlined_call_operand.hbm [shape: f32[16,32], index: 0, kind: input, shape index: {}]
  %s1 = inlined_call_operand.hbm [shape: bf16[32,32], index: 1, kind: input, shape index: {}]
  %s2 = inlined_call_operand.vmem [shape: f32[1,32], index: 2, kind: input, shape index: {}]
  %s3 = inlined_call_operand.hbm [shape: bf16[16,32], index: 3, kind: output, shape index: {}]
  %s4 = sld [smem:[#allocation0]]
  $region38: #{tpu_custom_call.1} parent=0
    _
  %s6 = ssub.s32 1, %s4
  %s7 = scalar_select 0, %s6, %s4
  $region1: #{tpu_custom_call.1} parent=0
    #allocation3 [shape = 'u8[8192]{0}', space=vmem, size = 0x2000, scoped, tag = 'input window, operand 0, single buffered']
    #allocation4 [shape = 's32[1]{0}', space=sflag, size = 0x4, scoped, tag = 'scoped memory for tpu_custom_call.1']
    #allocation5 [shape = 's32[1]{0}', space=sflag, size = 0x4, scoped, tag = 'scoped memory for tpu_custom_call.1']
    #allocation6 [shape = 'u8[8192]{0}', space=vmem, size = 0x2000, scoped, tag = 'input window, operand 1, single buffered']
    #allocation7 [shape = 's32[1]{0}', space=sflag, size = 0x4, scoped, tag = 'scoped memory for tpu_custom_call.1']
    #allocation8 [shape = 'u8[4096]{0}', space=vmem, size = 0x1000, scoped, tag = 'output window, operand 0, single buffered']
    %8 = vsyncpa [#allocation4], 0
    %9 = vsyncpa [#allocation7], 0
    %10 = vsyncpa [#allocation5], 0
    // Predicated region
    $region2: #{tpu_custom_call.1} parent=1 // pred_check
      _
    $region3: #{tpu_custom_call.1} parent=1 // pred_check_branch
      %12 = sbr.rel (0) target = $region5
    $region4: #{tpu_custom_call.1} parent=1 // pred_region
      %s14 = ssub.s32 256, 256
      %15 = vsyncadd [#allocation4], %s14
      %s16 = sshll.u32 [#allocation3], 4
      %s17 = int_to_ptr.vmem [resolvable:$true] %s16
      %22 = dma.hbm_to_vmem [thread:$0]  %s0, 256, %s17, [#allocation4], 128, 128, 8
    $region5: #{tpu_custom_call.1} parent=1 // pred_fallthru
      _
    // Predicated region
    $region6: #{tpu_custom_call.1} parent=1 // pred_check
      _
    $region7: #{tpu_custom_call.1} parent=1 // pred_check_branch
      %24 = sbr.rel (0) target = $region9
    $region8: #{tpu_custom_call.1} parent=1 // pred_region
      %s26 = ssub.s32 256, 256
      %27 = vsyncadd [#allocation7], %s26
      %s28 = sshll.u32 [#allocation6], 4
      %s29 = int_to_ptr.vmem [resolvable:$true] %s28
      %34 = dma.hbm_to_vmem [thread:$0]  %s1, 256, %s29, [#allocation7], 64, 64, 4
    $region9: #{tpu_custom_call.1} parent=1 // pred_fallthru
      _
    // Predicated region
    $region10: #{tpu_custom_call.1} parent=1 // pred_check
      _
    $region11: #{tpu_custom_call.1} parent=1 // pred_check_branch
      %36 = sbr.rel (0) target = $region13
    $region12: #{tpu_custom_call.1} parent=1 // pred_region
      _
    $region13: #{tpu_custom_call.1} parent=1 // pred_fallthru
      _
    // Predicated region
    $region14: #{tpu_custom_call.1} parent=1 // pred_check
      _
    $region15: #{tpu_custom_call.1} parent=1 // pred_check_branch
      %38 = sbr.rel (0) target = $region17
    $region16: #{tpu_custom_call.1} parent=1 // pred_region
      %39 = dma.done [#allocation4], 256
    $region17: #{tpu_custom_call.1} parent=1 // pred_fallthru
      _
    // Predicated region
    $region18: #{tpu_custom_call.1} parent=1 // pred_check
      _
    $region19: #{tpu_custom_call.1} parent=1 // pred_check_branch
      %41 = sbr.rel (0) target = $region21
    $region20: #{tpu_custom_call.1} parent=1 // pred_region
      %42 = dma.done [#allocation7], 256
    $region21: #{tpu_custom_call.1} parent=1 // pred_fallthru
      _
    %p44 = scmp.eq.s32.totalorder 0, 0
    // Predicated region
    $region22: #{tpu_custom_call.1} parent=1 // pred_check
      %p45 = pneg %p44
    $region23: #{tpu_custom_call.1} parent=1 // pred_check_branch
      %47 = sbr.rel (%p45) target = $region25
    $region24: #{tpu_custom_call.1} parent=1 // pred_region
      %v48 = vld [vmem:[%s2] sm:$0x1]
      %v50 = vlaneseq
      %v51 = vshrl.u32 %v50, 7
      %v52 = vsub.s32 0, %v51
      %v53 = vrot.slane %v48, %v52
      %vm55 = vcmask 261120
      %56 = vst.msk [vmem:[#allocation2] sm:$0xff] %vm55, %v53
      %57 = vst.msk [vmem:[#allocation2 + $0x8] sm:$0xff] %vm55, %v53
    $region25: #{tpu_custom_call.1} parent=1 // pred_fallthru
      _
    %v58 = vld [vmem:[#allocation2] sm:$0xff]
    %v59 = vld [vmem:[#allocation2 + $0x8] sm:$0xff]
    %v60 = vld [vmem:[#allocation3] sm:$0xff]
    %v61 = vld [vmem:[#allocation3 + $0x8] sm:$0xff]
    %v62 = vpack.c.bf16 %v61, %v60
    %v63 = vld [vmem:[#allocation6] sm:$0xf]
    %v64 = vld [vmem:[#allocation6 + $0x4] sm:$0xf]
    %v65 = vld [vmem:[#allocation6 + $0x8] sm:$0xf]
    %v66 = vld [vmem:[#allocation6 + $0xc] sm:$0xf]
    %v71 = vunpack.c.l.b16 %v63
    %v72 = vunpack.c.l.b16 %v64
    %v73 = vunpack.c.l.b16 %v65
    %v74 = vunpack.c.l.b16 %v66
    %v75 = vpack.c.b16 %v72, %v71
    %v76 = vpack.c.b16 %v74, %v73
    %vm79 = vcmask 261120
    %v81 = vsel %vm79, %v62, 0
    %83 = vmatprep.subr.bf16.mxu0 0
    %84 = vmatpush1.bf16.msra.mxu0 %v75
    %85 = vmatprep.subr.bf16.mxu0 0
    %86 = vmatpush1.bf16.msra.mxu0 %v76
    %87 = vmatprep.subr.bf16.mxu0 0
    %88 = vmatpush1.bf16.msra.mxu0 0
    %89 = vmatprep.subr.bf16.mxu0 0
    %90 = vmatpush1.bf16.msra.mxu0 0
    %91 = vmatprep.subr.bf16.mxu0 0
    %92 = vmatpush1.bf16.msra.mxu0 0
    %93 = vmatprep.subr.bf16.mxu0 0
    %94 = vmatpush1.bf16.msra.mxu0 0
    %95 = vmatprep.subr.bf16.mxu0 0
    %96 = vmatpush1.bf16.msra.mxu0 0
    %97 = vmatprep.subr.bf16.mxu0 0
    %98 = vmatpush1.bf16.msra.mxu0 0
    %99 = vmatprep.subr.bf16.mxu0 0
    %100 = vmatpush1.bf16.msra.mxu0 0
    %101 = vmatprep.subr.bf16.mxu0 0
    %102 = vmatpush1.bf16.msra.mxu0 0
    %103 = vmatprep.subr.bf16.mxu0 0
    %104 = vmatpush1.bf16.msra.mxu0 0
    %105 = vmatprep.subr.bf16.mxu0 0
    %106 = vmatpush1.bf16.msra.mxu0 0
    %107 = vmatprep.subr.bf16.mxu0 0
    %108 = vmatpush1.bf16.msra.mxu0 0
    %109 = vmatprep.subr.bf16.mxu0 0
    %110 = vmatpush1.bf16.msra.mxu0 0
    %111 = vmatprep.subr.bf16.mxu0 0
    %112 = vmatpush1.bf16.msra.mxu0 0
    %113 = vmatprep.subr.bf16.mxu0 0
    %114 = vmatpush1.bf16.msra.mxu0 0
    %115 = vmatprep.mubr.bf16.mxu0 0
    %116 = vmatmul.mubr.bf16.gmra.mrb[0].mxu0 %v81
    %v117 = vpop.f32.mrb[0].mxu0
    %v118 = vadd.f32 0.0, %v117
    %v119 = vpop.f32.mrb[0].mxu0
    %v120 = vpop.f32.mrb[0].mxu0
    %v121 = vadd.f32 0.0, %v120
    %v122 = vpop.f32.mrb[0].mxu0
    %123 = vdwg.mxu0
    %v124 = vadd.f32 %v58, %v118
    %v125 = vadd.f32 %v59, %v121
    %126 = vst.msk [vmem:[#allocation2] sm:$0xff] %vm79, %v124
    %127 = vst.msk [vmem:[#allocation2 + $0x8] sm:$0xff] %vm79, %v125
    // Predicated region
    $region26: #{tpu_custom_call.1} parent=1 // pred_check
      %p128 = pneg %p44
    $region27: #{tpu_custom_call.1} parent=1 // pred_check_branch
      %130 = sbr.rel (%p128) target = $region29
    $region28: #{tpu_custom_call.1} parent=1 // pred_region
      %v131 = vld [vmem:[#allocation2] sm:$0xff]
      %v132 = vld [vmem:[#allocation2 + $0x8] sm:$0xff]
      %v133 = vpack.c.bf16 %v132, %v131
      %v135 = vunpack.c.l.b16 %v133
      %v136 = vunpack.c.h.b16 %v133
      %v137 = vpack.c.b16 %v135, %v135
      %v138 = vpack.c.b16 %v136, %v136
      %vm141 = vcmask 257024
      %142 = vst.msk [vmem:[#allocation8] sm:$0xf] %vm141, %v137
      %143 = vst.msk [vmem:[#allocation8 + $0x4] sm:$0xf] %vm141, %v138
    $region29: #{tpu_custom_call.1} parent=1 // pred_fallthru
      _
    // Predicated region
    $region30: #{tpu_custom_call.1} parent=1 // pred_check
      _
    $region31: #{tpu_custom_call.1} parent=1 // pred_check_branch
      %145 = sbr.rel (0) target = $region33
    $region32: #{tpu_custom_call.1} parent=1 // pred_region
      %s147 = ssub.s32 128, 128
      %148 = vsyncadd [#allocation5], %s147
      %s149 = sshll.u32 [#allocation8], 4
      %s150 = int_to_ptr.vmem [resolvable:$true] %s149
      %155 = dma.vmem_to_hbm [thread:$0]  %s150, 128, %s3, [#allocation5], 64, 64, 4
    $region33: #{tpu_custom_call.1} parent=1 // pred_fallthru
      _
    // Predicated region
    $region34: #{tpu_custom_call.1} parent=1 // pred_check
      _
    $region35: #{tpu_custom_call.1} parent=1 // pred_check_branch
      %157 = sbr.rel (0) target = $region37
    $region36: #{tpu_custom_call.1} parent=1 // pred_region
      %158 = dma.done [#allocation5], 128
    $region37: #{tpu_custom_call.1} parent=1 // pred_fallthru
      _
    %159 = vsyncpa [#allocation4], 1
    %160 = vsyncpa [#allocation7], 1
    %161 = vsyncpa [#allocation5], 1

</llo_original>
